<compile_context>
chip_gen: v7x
topology: tpu7x:2x2x1
jax: 0.10.0
libtpu: 0.0.40
codegen_flags: <defaults>
</compile_context>

<pallas_src>
import numpy as np
import jax
import jax.numpy as jnp
from jax.experimental import pallas as pl
from jax.experimental.pallas import tpu as pltpu

HIDDEN = 32   # params['hidden_channels']
K = 32        # params['k']
OUT = 1       # params['out_channels']
GNN_NUM = 2   # params['gnn_num']  (two SAGEConv layers)
LANES = 128   # lane width: output padded to a full vreg lane dim


# ---------------- Pallas kernel: GNN towers + attention readout ----------------

def gnn_tower_kernel(x_ref, ahat_ref, amean_ref, pmean_ref, padd_ref, s_ref,
                     w_gcn, b_gcn, w_sage1, bl1, w_sage2, bl2, wc,
                     h_ref):
    f32 = jnp.float32
    bf16 = jnp.bfloat16

    def mm(a, b):
        # bf16 operands, f32 accumulation on the MXU.
        return jnp.dot(a.astype(bf16), b.astype(bf16),
                       preferred_element_type=f32)

    x = x_ref[...]
    ahat = ahat_ref[...]
    amean = amean_ref[...]

    # GCNConv(in, H) + relu:  A_hat @ (X @ W) + b
    x1 = jnp.maximum(mm(ahat, mm(x, w_gcn[...])) + b_gcn[...], 0.0)

    # SAGEConv(H, H) + relu, fused:  [A_mean @ x | x] @ [[W_l],[W_r]] + b_l
    cat1 = jnp.concatenate([mm(amean, x1), x1], axis=1)           # [2N, 2H]
    x2 = jnp.maximum(mm(cat1, w_sage1[...]) + bl1[...], 0.0)

    cat2 = jnp.concatenate([mm(amean, x2), x2], axis=1)           # [2N, 2H]
    x3 = jnp.maximum(mm(cat2, w_sage2[...]) + bl2[...], 0.0)

    # attention readout:
    #   c = tanh(global_mean_pool(x3) @ weight_c); per-node gate; add pool.
    c = jnp.tanh(mm(mm(pmean_ref[...], x3), wc[...]))             # [2B, H]
    c_node = mm(s_ref[...], c)                                    # [2N, H]
    att = jax.nn.sigmoid(jnp.sum(x3 * c_node, axis=1, keepdims=True))  # [2N,1]
    h = mm(padd_ref[...], att * x3)                               # [2B, H]

    # lane-dense store: pad H=32 -> 128 lanes so this is one unmasked full vst.
    pad = jnp.zeros((h.shape[0], LANES - h.shape[1]), f32)
    h_ref[...] = jnp.concatenate([h, pad], axis=1)


# ---------------- glue: graph -> dense matrices ----------------

def build_graph_mats(edge_index, batch, num_nodes, num_graphs):
    src = edge_index[0]
    dst = edge_index[1]
    # message passing aggregates incoming edges at the target: A[dst, src] = 1
    a = jnp.zeros((num_nodes, num_nodes), jnp.float32).at[dst, src].add(1.0)
    # GCN normalization with self loops
    a_sl = a + jnp.eye(num_nodes, dtype=jnp.float32)
    deg = jnp.sum(a_sl, axis=1)
    dinv = jax.lax.rsqrt(deg)
    a_hat = a_sl * dinv[:, None] * dinv[None, :]
    # mean-aggregation adjacency for SAGEConv (no self loops, 0 if no neighbors)
    in_deg = jnp.sum(a, axis=1, keepdims=True)
    a_mean = jnp.where(in_deg > 0, a / jnp.maximum(in_deg, 1.0), 0.0)
    # pooling / scatter matrices
    onehot = (batch[:, None] == jnp.arange(num_graphs)[None, :]).astype(jnp.float32)
    counts = jnp.sum(onehot, axis=0)
    p_add = onehot.T                                     # [B, N]
    p_mean = onehot.T / jnp.maximum(counts, 1.0)[:, None]
    return a_hat, a_mean, p_mean, p_add, onehot          # onehot == S [N, B]


def make_ring_graphs(num_graphs, nodes_per_graph):
    edges = []
    for g in range(num_graphs):
        base = g * nodes_per_graph
        for n in range(nodes_per_graph):
            a = base + n
            b = base + (n + 1) % nodes_per_graph
            edges.append((a, b))
            edges.append((b, a))
    edge_index = np.asarray(edges, dtype=np.int32).T        # [2, E]
    batch = np.repeat(np.arange(num_graphs), nodes_per_graph).astype(np.int32)
    return jnp.asarray(edge_index), jnp.asarray(batch)


def init_params(key, in_channels):
    H, k = HIDDEN, K
    ks = jax.random.split(key, 16)

    def glorot(kk, shape):
        fan_in, fan_out = shape[-2], shape[-1]
        lim = float(np.sqrt(6.0 / (fan_in + fan_out)))
        return jax.random.uniform(kk, shape, jnp.float32, -lim, lim)

    def small(kk, shape):
        return jax.random.uniform(kk, shape, jnp.float32, -0.1, 0.1)

    p = {}
    p["w_gcn"] = glorot(ks[0], (in_channels, H))
    p["b_gcn"] = small(ks[1], (1, H))
    p["wl1"] = glorot(ks[2], (H, H))
    p["bl1"] = small(ks[3], (1, H))
    p["wr1"] = glorot(ks[4], (H, H))
    p["wl2"] = glorot(ks[5], (H, H))
    p["bl2"] = small(ks[6], (1, H))
    p["wr2"] = glorot(ks[7], (H, H))
    p["weight_c"] = glorot(ks[8], (H, H))
    p["W"] = glorot(ks[9], (k, H, H))
    p["V"] = glorot(ks[10], (k, 2 * H))
    p["bias_k"] = small(ks[11], (1, k))
    p["mlp_w"] = glorot(ks[12], (k, OUT))
    p["mlp_b"] = small(ks[13], (1, OUT))
    return p


# ---------------- forward (kernel + tiny XLA tail) ----------------

def simgnn_forward(params, x_i, ei_i, batch_i, x_j, ei_j, batch_j, num_graphs):
    bf16 = jnp.bfloat16
    n_i = x_i.shape[0]
    nb = 2 * num_graphs  # total graphs across both sides

    # merge the pair into one block-diagonal batched graph: weights are shared,
    # so one tower pass with 2x the M dimension of every weight matmul.
    x_all = jnp.concatenate([x_i, x_j], axis=0)
    ei_all = jnp.concatenate([ei_i, ei_j + n_i], axis=1)
    batch_all = jnp.concatenate([batch_i, batch_j + num_graphs], axis=0)
    a_hat, a_mean, p_mean, p_add, s = build_graph_mats(
        ei_all, batch_all, x_all.shape[0], nb)

    # fused SAGE weights: [W_l ; W_r] -> one dot with a 2H-deep contraction.
    w_sage1 = jnp.concatenate([params["wl1"], params["wr1"]], axis=0)  # [2H,H]
    w_sage2 = jnp.concatenate([params["wl2"], params["wr2"]], axis=0)  # [2H,H]

    args = (
        x_all.astype(bf16), a_hat.astype(bf16), a_mean.astype(bf16),
        p_mean.astype(bf16), p_add.astype(bf16), s.astype(bf16),
        params["w_gcn"].astype(bf16), params["b_gcn"],
        w_sage1.astype(bf16), params["bl1"],
        w_sage2.astype(bf16), params["bl2"],
        params["weight_c"].astype(bf16),
    )
    vmem = pl.BlockSpec(memory_space=pltpu.MemorySpace.VMEM)
    h_pad = pl.pallas_call(
        gnn_tower_kernel,
        out_shape=jax.ShapeDtypeStruct((nb, LANES), jnp.float32),
        in_specs=[vmem] * len(args),
        out_specs=vmem,
    )(*args)

    h_all = h_pad[:, :HIDDEN]                      # strip the lane padding
    h_i, h_j = h_all[:num_graphs], h_all[num_graphs:]

    # NTN bilinear + linear terms and the [K,1] MLP: O(B*K*H) work, in XLA.
    g1 = jnp.einsum("bp,kpq,bq->bk", h_i, params["W"], h_j)
    g2 = jnp.concatenate([h_i, h_j], axis=1) @ params["V"].T
    g = g1 + g2 + params["bias_k"]
    scores = g @ params["mlp_w"] + params["mlp_b"]
    return scores[:, 0]


# ---------------- pure-JAX reference for verification ----------------

def reference_forward(params, x_i, ei_i, b_i, x_j, ei_j, b_j, num_graphs):
    def side(x, ei, batch):
        a_hat, a_mean, p_mean, p_add, s = build_graph_mats(
            ei, batch, x.shape[0], num_graphs)
        x1 = jax.nn.relu(a_hat @ (x @ params["w_gcn"]) + params["b_gcn"])
        x2 = jax.nn.relu((a_mean @ x1) @ params["wl1"] + params["bl1"]
                         + x1 @ params["wr1"])
        x3 = jax.nn.relu((a_mean @ x2) @ params["wl2"] + params["bl2"]
                         + x2 @ params["wr2"])
        c = jnp.tanh((p_mean @ x3) @ params["weight_c"])
        c_node = s @ c
        att = jax.nn.sigmoid(jnp.sum(x3 * c_node, axis=1, keepdims=True))
        return p_add @ (att * x3)

    h_i = side(x_i, ei_i, b_i)
    h_j = side(x_j, ei_j, b_j)
    g1 = jnp.einsum("bp,kpq,bq->bk", h_i, params["W"], h_j)
    g2 = jnp.concatenate([h_i, h_j], axis=1) @ params["V"].T
    g = g1 + g2 + params["bias_k"]
    scores = g @ params["mlp_w"] + params["mlp_b"]
    return scores[:, 0]


if __name__ == "__main__":
    key = jax.random.PRNGKey(0)
    in_channels = 8
    num_graphs = 2          # graphs per side (batch)
    nodes_per_graph = 8     # total nodes per side = 16

    k_param, k_xi, k_xj = jax.random.split(key, 3)
    params = init_params(k_param, in_channels)

    ei_i, batch_i = make_ring_graphs(num_graphs, nodes_per_graph)
    ei_j, batch_j = make_ring_graphs(num_graphs, nodes_per_graph)
    x_i = jax.random.normal(k_xi, (num_graphs * nodes_per_graph, in_channels),
                            jnp.float32)
    x_j = jax.random.normal(k_xj, (num_graphs * nodes_per_graph, in_channels),
                            jnp.float32)

    scores = simgnn_forward(params, x_i, ei_i, batch_i, x_j, ei_j, batch_j,
                            num_graphs)
    scores = jax.block_until_ready(scores)

    # f32 reference at 'highest' matmul precision (the kernel path uses bf16
    # operands with f32 accumulation, so the tolerance is wider than pure f32).
    with jax.default_matmul_precision("highest"):
        ref = reference_forward(params, x_i, ei_i, batch_i, x_j, ei_j, batch_j,
                                num_graphs)
        ref = jax.block_until_ready(ref)

    assert scores.shape == (num_graphs,)
    np.testing.assert_allclose(np.asarray(scores), np.asarray(ref),
                               rtol=5e-2, atol=2e-1)
    print("KERNEL_OK")
</pallas_src>

<mosaic_0001>
module attributes {stable_mosaic.version = 11 : i64} {
  func.func @gnn_tower_kernel(%arg0: memref<32x8xbf16, #tpu.memory_space<vmem>>, %arg1: memref<32x32xbf16, #tpu.memory_space<vmem>>, %arg2: memref<32x32xbf16, #tpu.memory_space<vmem>>, %arg3: memref<4x32xbf16, #tpu.memory_space<vmem>>, %arg4: memref<4x32xbf16, #tpu.memory_space<vmem>>, %arg5: memref<32x4xbf16, #tpu.memory_space<vmem>>, %arg6: memref<8x32xbf16, #tpu.memory_space<vmem>>, %arg7: memref<1x32xf32, #tpu.memory_space<vmem>>, %arg8: memref<64x32xbf16, #tpu.memory_space<vmem>>, %arg9: memref<1x32xf32, #tpu.memory_space<vmem>>, %arg10: memref<64x32xbf16, #tpu.memory_space<vmem>>, %arg11: memref<1x32xf32, #tpu.memory_space<vmem>>, %arg12: memref<32x32xbf16, #tpu.memory_space<vmem>>, %arg13: memref<4x128xf32, #tpu.memory_space<vmem>>) attributes {dimension_semantics = [], scalar_prefetch = 0 : i64, scratch_operands = 0 : i64, tpu.core_type = #tpu.core_type<tc>} {
    %c0 = arith.constant 0 : index
    %c0_0 = arith.constant 0 : index
    %0 = vector.load %arg0[%c0, %c0_0] : memref<32x8xbf16, #tpu.memory_space<vmem>>, vector<32x8xbf16>
    %c0_1 = arith.constant 0 : index
    %c0_2 = arith.constant 0 : index
    %1 = vector.load %arg1[%c0_1, %c0_2] : memref<32x32xbf16, #tpu.memory_space<vmem>>, vector<32x32xbf16>
    %c0_3 = arith.constant 0 : index
    %c0_4 = arith.constant 0 : index
    %2 = vector.load %arg2[%c0_3, %c0_4] : memref<32x32xbf16, #tpu.memory_space<vmem>>, vector<32x32xbf16>
    %c0_5 = arith.constant 0 : index
    %c0_6 = arith.constant 0 : index
    %3 = vector.load %arg6[%c0_5, %c0_6] : memref<8x32xbf16, #tpu.memory_space<vmem>>, vector<8x32xbf16>
    %cst = arith.constant dense<0.000000e+00> : vector<32x32xf32>
    %4 = tpu.matmul %0, %3, %cst {dimension_numbers = #tpu.dot_dimension_numbers<[1], [0], [0], [1], [0, 0, 1, 1], [], []>} : vector<32x8xbf16>, vector<8x32xbf16>, vector<32x32xf32> -> vector<32x32xf32>
    %5 = arith.truncf %4 : vector<32x32xf32> to vector<32x32xbf16>
    %cst_7 = arith.constant dense<0.000000e+00> : vector<32x32xf32>
    %6 = tpu.matmul %1, %5, %cst_7 {dimension_numbers = #tpu.dot_dimension_numbers<[1], [0], [0], [1], [0, 0, 1, 1], [], []>} : vector<32x32xbf16>, vector<32x32xbf16>, vector<32x32xf32> -> vector<32x32xf32>
    %c0_8 = arith.constant 0 : index
    %c0_9 = arith.constant 0 : index
    %7 = vector.load %arg7[%c0_8, %c0_9] : memref<1x32xf32, #tpu.memory_space<vmem>>, vector<1x32xf32>
    %8 = vector.broadcast %7 : vector<1x32xf32> to vector<32x32xf32>
    %9 = arith.addf %6, %8 : vector<32x32xf32>
    %cst_10 = arith.constant 0.000000e+00 : f32
    %10 = vector.broadcast %cst_10 : f32 to vector<32x32xf32>
    %11 = arith.maximumf %9, %10 : vector<32x32xf32>
    %12 = arith.truncf %11 : vector<32x32xf32> to vector<32x32xbf16>
    %cst_11 = arith.constant dense<0.000000e+00> : vector<32x32xf32>
    %13 = tpu.matmul %2, %12, %cst_11 {dimension_numbers = #tpu.dot_dimension_numbers<[1], [0], [0], [1], [0, 0, 1, 1], [], []>} : vector<32x32xbf16>, vector<32x32xbf16>, vector<32x32xf32> -> vector<32x32xf32>
    %14 = tpu.concatenate %13, %11 in 1 : vector<32x32xf32>, vector<32x32xf32> -> vector<32x64xf32>
    %c0_12 = arith.constant 0 : index
    %c0_13 = arith.constant 0 : index
    %15 = vector.load %arg8[%c0_12, %c0_13] : memref<64x32xbf16, #tpu.memory_space<vmem>>, vector<64x32xbf16>
    %16 = arith.truncf %14 : vector<32x64xf32> to vector<32x64xbf16>
    %cst_14 = arith.constant dense<0.000000e+00> : vector<32x32xf32>
    %17 = tpu.matmul %16, %15, %cst_14 {dimension_numbers = #tpu.dot_dimension_numbers<[1], [0], [0], [1], [0, 0, 1, 1], [], []>} : vector<32x64xbf16>, vector<64x32xbf16>, vector<32x32xf32> -> vector<32x32xf32>
    %c0_15 = arith.constant 0 : index
    %c0_16 = arith.constant 0 : index
    %18 = vector.load %arg9[%c0_15, %c0_16] : memref<1x32xf32, #tpu.memory_space<vmem>>, vector<1x32xf32>
    %19 = vector.broadcast %18 : vector<1x32xf32> to vector<32x32xf32>
    %20 = arith.addf %17, %19 : vector<32x32xf32>
    %cst_17 = arith.constant 0.000000e+00 : f32
    %21 = vector.broadcast %cst_17 : f32 to vector<32x32xf32>
    %22 = arith.maximumf %20, %21 : vector<32x32xf32>
    %23 = arith.truncf %22 : vector<32x32xf32> to vector<32x32xbf16>
    %cst_18 = arith.constant dense<0.000000e+00> : vector<32x32xf32>
    %24 = tpu.matmul %2, %23, %cst_18 {dimension_numbers = #tpu.dot_dimension_numbers<[1], [0], [0], [1], [0, 0, 1, 1], [], []>} : vector<32x32xbf16>, vector<32x32xbf16>, vector<32x32xf32> -> vector<32x32xf32>
    %25 = tpu.concatenate %24, %22 in 1 : vector<32x32xf32>, vector<32x32xf32> -> vector<32x64xf32>
    %c0_19 = arith.constant 0 : index
    %c0_20 = arith.constant 0 : index
    %26 = vector.load %arg10[%c0_19, %c0_20] : memref<64x32xbf16, #tpu.memory_space<vmem>>, vector<64x32xbf16>
    %27 = arith.truncf %25 : vector<32x64xf32> to vector<32x64xbf16>
    %cst_21 = arith.constant dense<0.000000e+00> : vector<32x32xf32>
    %28 = tpu.matmul %27, %26, %cst_21 {dimension_numbers = #tpu.dot_dimension_numbers<[1], [0], [0], [1], [0, 0, 1, 1], [], []>} : vector<32x64xbf16>, vector<64x32xbf16>, vector<32x32xf32> -> vector<32x32xf32>
    %c0_22 = arith.constant 0 : index
    %c0_23 = arith.constant 0 : index
    %29 = vector.load %arg11[%c0_22, %c0_23] : memref<1x32xf32, #tpu.memory_space<vmem>>, vector<1x32xf32>
    %30 = vector.broadcast %29 : vector<1x32xf32> to vector<32x32xf32>
    %31 = arith.addf %28, %30 : vector<32x32xf32>
    %cst_24 = arith.constant 0.000000e+00 : f32
    %32 = vector.broadcast %cst_24 : f32 to vector<32x32xf32>
    %33 = arith.maximumf %31, %32 : vector<32x32xf32>
    %c0_25 = arith.constant 0 : index
    %c0_26 = arith.constant 0 : index
    %34 = vector.load %arg3[%c0_25, %c0_26] : memref<4x32xbf16, #tpu.memory_space<vmem>>, vector<4x32xbf16>
    %35 = arith.truncf %33 : vector<32x32xf32> to vector<32x32xbf16>
    %cst_27 = arith.constant dense<0.000000e+00> : vector<4x32xf32>
    %36 = tpu.matmul %34, %35, %cst_27 {dimension_numbers = #tpu.dot_dimension_numbers<[1], [0], [0], [1], [0, 0, 1, 1], [], []>} : vector<4x32xbf16>, vector<32x32xbf16>, vector<4x32xf32> -> vector<4x32xf32>
    %c0_28 = arith.constant 0 : index
    %c0_29 = arith.constant 0 : index
    %37 = vector.load %arg12[%c0_28, %c0_29] : memref<32x32xbf16, #tpu.memory_space<vmem>>, vector<32x32xbf16>
    %38 = arith.truncf %36 : vector<4x32xf32> to vector<4x32xbf16>
    %cst_30 = arith.constant dense<0.000000e+00> : vector<4x32xf32>
    %39 = tpu.matmul %38, %37, %cst_30 {dimension_numbers = #tpu.dot_dimension_numbers<[1], [0], [0], [1], [0, 0, 1, 1], [], []>} : vector<4x32xbf16>, vector<32x32xbf16>, vector<4x32xf32> -> vector<4x32xf32>
    %40 = math.tanh %39 : vector<4x32xf32>
    %c0_31 = arith.constant 0 : index
    %c0_32 = arith.constant 0 : index
    %41 = vector.load %arg5[%c0_31, %c0_32] : memref<32x4xbf16, #tpu.memory_space<vmem>>, vector<32x4xbf16>
    %42 = arith.truncf %40 : vector<4x32xf32> to vector<4x32xbf16>
    %cst_33 = arith.constant dense<0.000000e+00> : vector<32x32xf32>
    %43 = tpu.matmul %41, %42, %cst_33 {dimension_numbers = #tpu.dot_dimension_numbers<[1], [0], [0], [1], [0, 0, 1, 1], [], []>} : vector<32x4xbf16>, vector<4x32xbf16>, vector<32x32xf32> -> vector<32x32xf32>
    %44 = arith.mulf %33, %43 : vector<32x32xf32>
    %cst_34 = arith.constant dense<0.000000e+00> : vector<32xf32>
    %45 = vector.multi_reduction <add>, %44, %cst_34 [1] : vector<32x32xf32> to vector<32xf32>
    %46 = vector.shape_cast %45 : vector<32xf32> to vector<32x1xf32>
    %47 = arith.negf %46 : vector<32x1xf32>
    %48 = math.exp %47 : vector<32x1xf32>
    %cst_35 = arith.constant 1.000000e+00 : f32
    %49 = vector.broadcast %cst_35 : f32 to vector<32x1xf32>
    %50 = arith.addf %49, %48 : vector<32x1xf32>
    %51 = arith.divf %49, %50 : vector<32x1xf32>
    %c0_36 = arith.constant 0 : index
    %c0_37 = arith.constant 0 : index
    %52 = vector.load %arg4[%c0_36, %c0_37] : memref<4x32xbf16, #tpu.memory_space<vmem>>, vector<4x32xbf16>
    %53 = vector.broadcast %51 : vector<32x1xf32> to vector<32x32xf32>
    %54 = arith.mulf %53, %33 : vector<32x32xf32>
    %55 = arith.truncf %54 : vector<32x32xf32> to vector<32x32xbf16>
    %cst_38 = arith.constant dense<0.000000e+00> : vector<4x32xf32>
    %56 = tpu.matmul %52, %55, %cst_38 {dimension_numbers = #tpu.dot_dimension_numbers<[1], [0], [0], [1], [0, 0, 1, 1], [], []>} : vector<4x32xbf16>, vector<32x32xbf16>, vector<4x32xf32> -> vector<4x32xf32>
    %cst_39 = arith.constant 0.000000e+00 : f32
    %57 = vector.broadcast %cst_39 : f32 to vector<4x96xf32>
    %58 = tpu.concatenate %56, %57 in 1 : vector<4x32xf32>, vector<4x96xf32> -> vector<4x128xf32>
    %c0_40 = arith.constant 0 : index
    %c0_41 = arith.constant 0 : index
    %59 = vector.load %arg13[%c0_40, %c0_41] : memref<4x128xf32, #tpu.memory_space<vmem>>, vector<4x128xf32>
    tpu.vector_store %arg13[%c0_40, %c0_41], %58 {strides = array<i32>} : memref<4x128xf32, #tpu.memory_space<vmem>>, vector<4x128xf32>,
    return
  }
}

</mosaic_0001>

<llo_original>
// kernel: tpu_custom_call.1
$region0: #{tpu_custom_call.1}
  #allocation0 [shape = 'u32[]', space=smem, size = 0x4, offset = 0x4, fixed_abs, tag = 'smem constant byte address 0x4 - core index']
  #allocation1 [shape = 'u32[144,128]{1,0:T(1,128)}', space=vmem, size = 0x12000, scoped, tag = 'internal scratch']
  %s0 = inlined_call_operand.vmem [shape: bf16[32,8], index: 0, kind: input, shape index: {}]
  %s1 = inlined_call_operand.vmem [shape: bf16[32,32], index: 1, kind: input, shape index: {}]
  %s2 = inlined_call_operand.vmem [shape: bf16[32,32], index: 2, kind: input, shape index: {}]
  %s3 = inlined_call_operand.vmem [shape: bf16[4,32], index: 3, kind: input, shape index: {}]
  %s4 = inlined_call_operand.vmem [shape: bf16[4,32], index: 4, kind: input, shape index: {}]
  %s5 = inlined_call_operand.vmem [shape: bf16[32,4], index: 5, kind: input, shape index: {}]
  %s6 = inlined_call_operand.vmem [shape: bf16[8,32], index: 6, kind: input, shape index: {}]
  %s7 = inlined_call_operand.vmem [shape: f32[1,32], index: 7, kind: input, shape index: {}]
  %s8 = inlined_call_operand.vmem [shape: bf16[64,32], index: 8, kind: input, shape index: {}]
  %s9 = inlined_call_operand.vmem [shape: f32[1,32], index: 9, kind: input, shape index: {}]
  %s10 = inlined_call_operand.vmem [shape: bf16[64,32], index: 10, kind: input, shape index: {}]
  %s11 = inlined_call_operand.vmem [shape: f32[1,32], index: 11, kind: input, shape index: {}]
  %s12 = inlined_call_operand.vmem [shape: bf16[32,32], index: 12, kind: input, shape index: {}]
  %s13 = inlined_call_operand.hbm [shape: f32[4,128], index: 13, kind: output, shape index: {}]
  %s14 = sld [smem:[#allocation0]]
  $region62: #{tpu_custom_call.1} parent=0
    _
  %s16 = ssub.s32 1, %s14
  %s17 = scalar_select 0, %s16, %s14
  $region1: #{tpu_custom_call.1} parent=0
    #allocation2 [shape = 'u8[2048]{0}', space=vmem, size = 0x800, scoped, tag = 'output window, operand 0, single buffered']
    #allocation3 [shape = 's32[1]{0}', space=sflag, size = 0x4, scoped, tag = 'scoped memory for tpu_custom_call.1']
    %18 = vsyncpa [#allocation3], 0
    // Predicated region
    $region2: #{tpu_custom_call.1} parent=1 // pred_check
      _
    $region3: #{tpu_custom_call.1} parent=1 // pred_check_branch
      %20 = sbr.rel (0) target = $region5
    $region4: #{tpu_custom_call.1} parent=1 // pred_region
      _
    $region5: #{tpu_custom_call.1} parent=1 // pred_fallthru
      _
    // Predicated region
    $region6: #{tpu_custom_call.1} parent=1 // pred_check
      _
    $region7: #{tpu_custom_call.1} parent=1 // pred_check_branch
      %22 = sbr.rel (0) target = $region9
    $region8: #{tpu_custom_call.1} parent=1 // pred_region
      _
    $region9: #{tpu_custom_call.1} parent=1 // pred_fallthru
      _
    // Predicated region
    $region10: #{tpu_custom_call.1} parent=1 // pred_check
      _
    $region11: #{tpu_custom_call.1} parent=1 // pred_check_branch
      %24 = sbr.rel (0) target = $region13
    $region12: #{tpu_custom_call.1} parent=1 // pred_region
      _
    $region13: #{tpu_custom_call.1} parent=1 // pred_fallthru
      _
    // Predicated region
    $region14: #{tpu_custom_call.1} parent=1 // pred_check
      _
    $region15: #{tpu_custom_call.1} parent=1 // pred_check_branch
      %26 = sbr.rel (0) target = $region17
    $region16: #{tpu_custom_call.1} parent=1 // pred_region
      _
    $region17: #{tpu_custom_call.1} parent=1 // pred_fallthru
      _
    // Predicated region
    $region18: #{tpu_custom_call.1} parent=1 // pred_check
      _
    $region19: #{tpu_custom_call.1} parent=1 // pred_check_branch
      %28 = sbr.rel (0) target = $region21
    $region20: #{tpu_custom_call.1} parent=1 // pred_region
      _
    $region21: #{tpu_custom_call.1} parent=1 // pred_fallthru
      _
    // Predicated region
    $region22: #{tpu_custom_call.1} parent=1 // pred_check
      _
    $region23: #{tpu_custom_call.1} parent=1 // pred_check_branch
      %30 = sbr.rel (0) target = $region25
    $region24: #{tpu_custom_call.1} parent=1 // pred_region
      _
    $region25: #{tpu_custom_call.1} parent=1 // pred_fallthru
      _
    // Predicated region
    $region26: #{tpu_custom_call.1} parent=1 // pred_check
      _
    $region27: #{tpu_custom_call.1} parent=1 // pred_check_branch
      %32 = sbr.rel (0) target = $region29
    $region28: #{tpu_custom_call.1} parent=1 // pred_region
      _
    $region29: #{tpu_custom_call.1} parent=1 // pred_fallthru
      _
    // Predicated region
    $region30: #{tpu_custom_call.1} parent=1 // pred_check
      _
    $region31: #{tpu_custom_call.1} parent=1 // pred_check_branch
      %34 = sbr.rel (0) target = $region33
    $region32: #{tpu_custom_call.1} parent=1 // pred_region
      _
    $region33: #{tpu_custom_call.1} parent=1 // pred_fallthru
      _
    // Predicated region
    $region34: #{tpu_custom_call.1} parent=1 // pred_check
      _
    $region35: #{tpu_custom_call.1} parent=1 // pred_check_branch
      %36 = sbr.rel (0) target = $region37
    $region36: #{tpu_custom_call.1} parent=1 // pred_region
      _
    $region37: #{tpu_custom_call.1} parent=1 // pred_fallthru
      _
    // Predicated region
    $region38: #{tpu_custom_call.1} parent=1 // pred_check
      _
    $region39: #{tpu_custom_call.1} parent=1 // pred_check_branch
      %38 = sbr.rel (0) target = $region41
    $region40: #{tpu_custom_call.1} parent=1 // pred_region
      _
    $region41: #{tpu_custom_call.1} parent=1 // pred_fallthru
      _
    // Predicated region
    $region42: #{tpu_custom_call.1} parent=1 // pred_check
      _
    $region43: #{tpu_custom_call.1} parent=1 // pred_check_branch
      %40 = sbr.rel (0) target = $region45
    $region44: #{tpu_custom_call.1} parent=1 // pred_region
      _
    $region45: #{tpu_custom_call.1} parent=1 // pred_fallthru
      _
    // Predicated region
    $region46: #{tpu_custom_call.1} parent=1 // pred_check
      _
    $region47: #{tpu_custom_call.1} parent=1 // pred_check_branch
      %42 = sbr.rel (0) target = $region49
    $region48: #{tpu_custom_call.1} parent=1 // pred_region
      _
    $region49: #{tpu_custom_call.1} parent=1 // pred_fallthru
      _
    // Predicated region
    $region50: #{tpu_custom_call.1} parent=1 // pred_check
      _
    $region51: #{tpu_custom_call.1} parent=1 // pred_check_branch
      %44 = sbr.rel (0) target = $region53
    $region52: #{tpu_custom_call.1} parent=1 // pred_region
      _
    $region53: #{tpu_custom_call.1} parent=1 // pred_fallthru
      _
    %v46 = vld [vmem:[%s0] sm:$0xf]
    %v47 = vld [vmem:[%s0 + $0x4] sm:$0xf]
    %v48 = vld [vmem:[%s0 + $0x8] sm:$0xf]
    %v49 = vld [vmem:[%s0 + $0xc] sm:$0xf]
    %v50 = vld [vmem:[%s1] sm:$0xf]
    %v51 = vld [vmem:[%s1 + $0x4] sm:$0xf]
    %v52 = vld [vmem:[%s1 + $0x8] sm:$0xf]
    %v53 = vld [vmem:[%s1 + $0xc] sm:$0xf]
    %v54 = vld [vmem:[%s2] sm:$0xf]
    %v55 = vld [vmem:[%s2 + $0x4] sm:$0xf]
    %v56 = vld [vmem:[%s2 + $0x8] sm:$0xf]
    %v57 = vld [vmem:[%s2 + $0xc] sm:$0xf]
    %v58 = vld [vmem:[%s6] sm:$0xf]
    %v63 = vunpack.c.l.b16 %v46
    %v64 = vunpack.c.l.b16 %v47
    %v65 = vunpack.c.l.b16 %v48
    %v66 = vunpack.c.l.b16 %v49
    %v67 = vpack.c.b16 %v64, %v63
    %v68 = vpack.c.b16 %v66, %v65
    %vm69 = vcmask 64512
    %v71 = vsel %vm69, %v67, 0
    %v74 = vsel %vm69, %v68, 0
    %vm76 = vcmask 1043456
    %v78 = vsel %vm76, %v58, 0
    %80 = vmatprep.subr.bf16.mxu0 0
    %81 = vmatpush1.bf16.msra.mxu0 %v78
    %82 = vmatprep.subr.bf16.mxu0 0
    %83 = vmatpush1.bf16.msra.mxu0 0
    %84 = vmatprep.subr.bf16.mxu0 0
    %85 = vmatpush1.bf16.msra.mxu0 0
    %86 = vmatprep.subr.bf16.mxu0 0
    %87 = vmatpush1.bf16.msra.mxu0 0
    %88 = vmatprep.subr.bf16.mxu0 0
    %89 = vmatpush1.bf16.msra.mxu0 0
    %90 = vmatprep.subr.bf16.mxu0 0
    %91 = vmatpush1.bf16.msra.mxu0 0
    %92 = vmatprep.subr.bf16.mxu0 0
    %93 = vmatpush1.bf16.msra.mxu0 0
    %94 = vmatprep.subr.bf16.mxu0 0
    %95 = vmatpush1.bf16.msra.mxu0 0
    %96 = vmatprep.subr.bf16.mxu0 0
    %97 = vmatpush1.bf16.msra.mxu0 0
    %98 = vmatprep.subr.bf16.mxu0 0
    %99 = vmatpush1.bf16.msra.mxu0 0
    %100 = vmatprep.subr.bf16.mxu0 0
    %101 = vmatpush1.bf16.msra.mxu0 0
    %102 = vmatprep.subr.bf16.mxu0 0
    %103 = vmatpush1.bf16.msra.mxu0 0
    %104 = vmatprep.subr.bf16.mxu0 0
    %105 = vmatpush1.bf16.msra.mxu0 0
    %106 = vmatprep.subr.bf16.mxu0 0
    %107 = vmatpush1.bf16.msra.mxu0 0
    %108 = vmatprep.subr.bf16.mxu0 0
    %109 = vmatpush1.bf16.msra.mxu0 0
    %110 = vmatprep.subr.bf16.mxu0 0
    %111 = vmatpush1.bf16.msra.mxu0 0
    %112 = vmatprep.mubr.bf16.mxu0 0
    %113 = vmatmul.mubr.bf16.gmra.mrb[0].mxu0 %v71
    %v114 = vpop.f32.mrb[0].mxu0
    %v115 = vadd.f32 0.0, %v114
    %v116 = vpop.f32.mrb[0].mxu0
    %v117 = vpop.f32.mrb[0].mxu0
    %v118 = vadd.f32 0.0, %v117
    %v119 = vpop.f32.mrb[0].mxu0
    %120 = vmatprep.mubr.bf16.mxu0 0
    %121 = vmatmul.mubr.bf16.gmra.mrb[0].mxu0 %v74
    %v122 = vpop.f32.mrb[0].mxu0
    %v123 = vadd.f32 0.0, %v122
    %v124 = vpop.f32.mrb[0].mxu0
    %v125 = vpop.f32.mrb[0].mxu0
    %v126 = vadd.f32 0.0, %v125
    %v127 = vpop.f32.mrb[0].mxu0
    %128 = vdwg.mxu0
    %v129 = vpack.c.bf16 %v118, %v115
    %v130 = vpack.c.bf16 %v126, %v123
    %v131 = vld [vmem:[%s7] sm:$0x1]
    %v133 = vlaneseq
    %v134 = vshrl.u32 %v133, 7
    %v135 = vsub.s32 0, %v134
    %v136 = vrot.slane %v131, %v135
    %v142 = vunpack.c.l.b16 %v50
    %v143 = vunpack.c.l.b16 %v51
    %v144 = vunpack.c.l.b16 %v52
    %v145 = vunpack.c.l.b16 %v53
    %v146 = vpack.c.b16 %v143, %v142
    %v147 = vpack.c.b16 %v145, %v144
    %vm148 = vcmask 261120
    %v150 = vsel %vm148, %v146, 0
    %v153 = vsel %vm148, %v147, 0
    %155 = vmatprep.subr.bf16.mxu0 0
    %156 = vmatpush1.bf16.msra.mxu0 %v129
    %157 = vmatprep.subr.bf16.mxu0 0
    %158 = vmatpush1.bf16.msra.mxu0 %v130
    %159 = vmatprep.subr.bf16.mxu0 0
    %160 = vmatpush1.bf16.msra.mxu0 0
    %161 = vmatprep.subr.bf16.mxu0 0
    %162 = vmatpush1.bf16.msra.mxu0 0
    %163 = vmatprep.subr.bf16.mxu0 0
    %164 = vmatpush1.bf16.msra.mxu0 0
    %165 = vmatprep.subr.bf16.mxu0 0
    %166 = vmatpush1.bf16.msra.mxu0 0
    %167 = vmatprep.subr.bf16.mxu0 0
    %168 = vmatpush1.bf16.msra.mxu0 0
    %169 = vmatprep.subr.bf16.mxu0 0
    %170 = vmatpush1.bf16.msra.mxu0 0
    %171 = vmatprep.subr.bf16.mxu0 0
    %172 = vmatpush1.bf16.msra.mxu0 0
    %173 = vmatprep.subr.bf16.mxu0 0
    %174 = vmatpush1.bf16.msra.mxu0 0
    %175 = vmatprep.subr.bf16.mxu0 0
    %176 = vmatpush1.bf16.msra.mxu0 0
    %177 = vmatprep.subr.bf16.mxu0 0
    %178 = vmatpush1.bf16.msra.mxu0 0
    %179 = vmatprep.subr.bf16.mxu0 0
    %180 = vmatpush1.bf16.msra.mxu0 0
    %181 = vmatprep.subr.bf16.mxu0 0
    %182 = vmatpush1.bf16.msra.mxu0 0
    %183 = vmatprep.subr.bf16.mxu0 0
    %184 = vmatpush1.bf16.msra.mxu0 0
    %185 = vmatprep.subr.bf16.mxu0 0
    %186 = vmatpush1.bf16.msra.mxu0 0
    %187 = vmatprep.mubr.bf16.mxu0 0
    %188 = vmatmul.mubr.bf16.gmra.mrb[0].mxu0 %v150
    %v189 = vpop.f32.mrb[0].mxu0
    %v190 = vadd.f32 %v136, %v189
    %v191 = vpop.f32.mrb[0].mxu0
    %v192 = vpop.f32.mrb[0].mxu0
    %v193 = vadd.f32 %v136, %v192
    %v194 = vpop.f32.mrb[0].mxu0
    %195 = vmatprep.mubr.bf16.mxu0 0
    %196 = vmatmul.mubr.bf16.gmra.mrb[0].mxu0 %v153
    %v197 = vpop.f32.mrb[0].mxu0
    %v198 = vadd.f32 %v136, %v197
    %v199 = vpop.f32.mrb[0].mxu0
    %v200 = vpop.f32.mrb[0].mxu0
    %v201 = vadd.f32 %v136, %v200
    %v202 = vpop.f32.mrb[0].mxu0
    %203 = vdwg.mxu0
    %v204 = vmax.f32 %v190, 0.0
    %v205 = vmax.f32 %v193, 0.0
    %v206 = vmax.f32 %v198, 0.0
    %v207 = vmax.f32 %v201, 0.0
    %v208 = vpack.c.bf16 %v205, %v204
    %v209 = vpack.c.bf16 %v207, %v206
    %v214 = vunpack.c.l.b16 %v54
    %v215 = vunpack.c.l.b16 %v55
    %v216 = vunpack.c.l.b16 %v56
    %v217 = vunpack.c.l.b16 %v57
    %v218 = vpack.c.b16 %v215, %v214
    %v219 = vpack.c.b16 %v217, %v216
    %v221 = vsel %vm148, %v218, 0
    %v224 = vsel %vm148, %v219, 0
    %226 = vmatprep.subr.bf16.mxu0 0
    %227 = vmatpush1.bf16.msra.mxu0 %v208
    %228 = vmatprep.subr.bf16.mxu0 0
    %229 = vmatpush1.bf16.msra.mxu0 %v209
    %230 = vmatprep.subr.bf16.mxu0 0
    %231 = vmatpush1.bf16.msra.mxu0 0
    %232 = vmatprep.subr.bf16.mxu0 0
    %233 = vmatpush1.bf16.msra.mxu0 0
    %234 = vmatprep.subr.bf16.mxu0 0
    %235 = vmatpush1.bf16.msra.mxu0 0
    %236 = vmatprep.subr.bf16.mxu0 0
    %237 = vmatpush1.bf16.msra.mxu0 0
    %238 = vmatprep.subr.bf16.mxu0 0
    %239 = vmatpush1.bf16.msra.mxu0 0
    %240 = vmatprep.subr.bf16.mxu0 0
    %241 = vmatpush1.bf16.msra.mxu0 0
    %242 = vmatprep.subr.bf16.mxu0 0
    %243 = vmatpush1.bf16.msra.mxu0 0
    %244 = vmatprep.subr.bf16.mxu0 0
    %245 = vmatpush1.bf16.msra.mxu0 0
    %246 = vmatprep.subr.bf16.mxu0 0
    %247 = vmatpush1.bf16.msra.mxu0 0
    %248 = vmatprep.subr.bf16.mxu0 0
    %249 = vmatpush1.bf16.msra.mxu0 0
    %250 = vmatprep.subr.bf16.mxu0 0
    %251 = vmatpush1.bf16.msra.mxu0 0
    %252 = vmatprep.subr.bf16.mxu0 0
    %253 = vmatpush1.bf16.msra.mxu0 0
    %254 = vmatprep.subr.bf16.mxu0 0
    %255 = vmatpush1.bf16.msra.mxu0 0
    %256 = vmatprep.subr.bf16.mxu0 0
    %257 = vmatpush1.bf16.msra.mxu0 0
    %258 = vmatprep.mubr.bf16.mxu0 0
    %259 = vmatmul.mubr.bf16.gmra.mrb[0].mxu0 %v221
    %v260 = vpop.f32.mrb[0].mxu0
    %v261 = vadd.f32 0.0, %v260
    %v262 = vpop.f32.mrb[0].mxu0
    %v263 = vpop.f32.mrb[0].mxu0
    %v264 = vadd.f32 0.0, %v263
    %v265 = vpop.f32.mrb[0].mxu0
    %266 = vmatprep.mubr.bf16.mxu0 0
    %267 = vmatmul.mubr.bf16.gmra.mrb[0].mxu0 %v224
    %v268 = vpop.f32.mrb[0].mxu0
    %v269 = vadd.f32 0.0, %v268
    %v270 = vpop.f32.mrb[0].mxu0
    %v271 = vpop.f32.mrb[0].mxu0
    %v272 = vadd.f32 0.0, %v271
    %v273 = vpop.f32.mrb[0].mxu0
    %274 = vdwg.mxu0
    %279 = vrot.lane.b32.xlu0 %v204, 32
    %v280 = vpop.permute.xlu0 %279
    %281 = vrot.lane.b32.xlu0 %v205, 32
    %v282 = vpop.permute.xlu0 %281
    %283 = vrot.lane.b32.xlu0 %v206, 32
    %v284 = vpop.permute.xlu0 %283
    %285 = vrot.lane.b32.xlu0 %v207, 32
    %v286 = vpop.permute.xlu0 %285
    %v291 = vsel %vm148, %v261, %v280
    %v292 = vsel %vm148, %v264, %v282
    %v293 = vsel %vm148, %v269, %v284
    %v294 = vsel %vm148, %v272, %v286
    %v295 = vld [vmem:[%s8] sm:$0xf]
    %v296 = vld [vmem:[%s8 + $0x4] sm:$0xf]
    %v297 = vld [vmem:[%s8 + $0x8] sm:$0xf]
    %v298 = vld [vmem:[%s8 + $0xc] sm:$0xf]
    %v299 = vld [vmem:[%s8 + $0x10] sm:$0xf]
    %v300 = vld [vmem:[%s8 + $0x14] sm:$0xf]
    %v301 = vld [vmem:[%s8 + $0x18] sm:$0xf]
    %v302 = vld [vmem:[%s8 + $0x1c] sm:$0xf]
    %v303 = vpack.c.bf16 %v292, %v291
    %v304 = vpack.c.bf16 %v294, %v293
    %v305 = vld [vmem:[%s9] sm:$0x1]
    %v307 = vlaneseq
    %v308 = vshrl.u32 %v307, 7
    %v309 = vsub.s32 0, %v308
    %v310 = vrot.slane %v305, %v309
    %v320 = vunpack.c.l.b16 %v295
    %v321 = vunpack.c.l.b16 %v296
    %v322 = vunpack.c.l.b16 %v297
    %v323 = vunpack.c.l.b16 %v298
    %v324 = vunpack.c.l.b16 %v299
    %v325 = vunpack.c.l.b16 %v300
    %v326 = vunpack.c.l.b16 %v301
    %v327 = vunpack.c.l.b16 %v302
    %v328 = vpack.c.b16 %v321, %v320
    %v329 = vpack.c.b16 %v323, %v322
    %v330 = vpack.c.b16 %v325, %v324
    %v331 = vpack.c.b16 %v327, %v326
    %vm336 = vcmask 523264
    %v338 = vsel %vm336, %v303, 0
    %v341 = vsel %vm336, %v304, 0
    %343 = vmatprep.subr.bf16.mxu0 0
    %344 = vmatpush1.bf16.msra.mxu0 %v328
    %345 = vmatprep.subr.bf16.mxu0 0
    %346 = vmatpush1.bf16.msra.mxu0 %v329
    %347 = vmatprep.subr.bf16.mxu0 0
    %348 = vmatpush1.bf16.msra.mxu0 %v330
    %349 = vmatprep.subr.bf16.mxu0 0
    %350 = vmatpush1.bf16.msra.mxu0 %v331
    %351 = vmatprep.subr.bf16.mxu0 0
    %352 = vmatpush1.bf16.msra.mxu0 0
    %353 = vmatprep.subr.bf16.mxu0 0
    %354 = vmatpush1.bf16.msra.mxu0 0
    %355 = vmatprep.subr.bf16.mxu0 0
    %356 = vmatpush1.bf16.msra.mxu0 0
    %357 = vmatprep.subr.bf16.mxu0 0
    %358 = vmatpush1.bf16.msra.mxu0 0
    %359 = vmatprep.subr.bf16.mxu0 0
    %360 = vmatpush1.bf16.msra.mxu0 0
    %361 = vmatprep.subr.bf16.mxu0 0
    %362 = vmatpush1.bf16.msra.mxu0 0
    %363 = vmatprep.subr.bf16.mxu0 0
    %364 = vmatpush1.bf16.msra.mxu0 0
    %365 = vmatprep.subr.bf16.mxu0 0
    %366 = vmatpush1.bf16.msra.mxu0 0
    %367 = vmatprep.subr.bf16.mxu0 0
    %368 = vmatpush1.bf16.msra.mxu0 0
    %369 = vmatprep.subr.bf16.mxu0 0
    %370 = vmatpush1.bf16.msra.mxu0 0
    %371 = vmatprep.subr.bf16.mxu0 0
    %372 = vmatpush1.bf16.msra.mxu0 0
    %373 = vmatprep.subr.bf16.mxu0 0
    %374 = vmatpush1.bf16.msra.mxu0 0
    %375 = vmatprep.mubr.bf16.mxu0 0
    %376 = vmatmul.mubr.bf16.gmra.mrb[0].mxu0 %v338
    %v377 = vpop.f32.mrb[0].mxu0
    %v378 = vadd.f32 %v310, %v377
    %v379 = vpop.f32.mrb[0].mxu0
    %v380 = vpop.f32.mrb[0].mxu0
    %v381 = vadd.f32 %v310, %v380
    %v382 = vpop.f32.mrb[0].mxu0
    %383 = vmatprep.mubr.bf16.mxu0 0
    %384 = vmatmul.mubr.bf16.gmra.mrb[0].mxu0 %v341
    %v385 = vpop.f32.mrb[0].mxu0
    %v386 = vadd.f32 %v310, %v385
    %v387 = vpop.f32.mrb[0].mxu0
    %v388 = vpop.f32.mrb[0].mxu0
    %v389 = vadd.f32 %v310, %v388
    %v390 = vpop.f32.mrb[0].mxu0
    %391 = vdwg.mxu0
    %v392 = vmax.f32 %v378, 0.0
    %v393 = vmax.f32 %v381, 0.0
    %v394 = vmax.f32 %v386, 0.0
    %v395 = vmax.f32 %v389, 0.0
    %v396 = vpack.c.bf16 %v393, %v392
    %v397 = vpack.c.bf16 %v395, %v394
    %398 = vmatprep.subr.bf16.mxu0 0
    %399 = vmatpush1.bf16.msra.mxu0 %v396
    %400 = vmatprep.subr.bf16.mxu0 0
    %401 = vmatpush1.bf16.msra.mxu0 %v397
    %402 = vmatprep.subr.bf16.mxu0 0
    %403 = vmatpush1.bf16.msra.mxu0 0
    %404 = vmatprep.subr.bf16.mxu0 0
    %405 = vmatpush1.bf16.msra.mxu0 0
    %406 = vmatprep.subr.bf16.mxu0 0
    %407 = vmatpush1.bf16.msra.mxu0 0
    %408 = vmatprep.subr.bf16.mxu0 0
    %409 = vmatpush1.bf16.msra.mxu0 0
    %410 = vmatprep.subr.bf16.mxu0 0
    %411 = vmatpush1.bf16.msra.mxu0 0
    %412 = vmatprep.subr.bf16.mxu0 0
    %413 = vmatpush1.bf16.msra.mxu0 0
    %414 = vmatprep.subr.bf16.mxu0 0
    %415 = vmatpush1.bf16.msra.mxu0 0
    %416 = vmatprep.subr.bf16.mxu0 0
    %417 = vmatpush1.bf16.msra.mxu0 0
    %418 = vmatprep.subr.bf16.mxu0 0
    %419 = vmatpush1.bf16.msra.mxu0 0
    %420 = vmatprep.subr.bf16.mxu0 0
    %421 = vmatpush1.bf16.msra.mxu0 0
    %422 = vmatprep.subr.bf16.mxu0 0
    %423 = vmatpush1.bf16.msra.mxu0 0
    %424 = vmatprep.subr.bf16.mxu0 0
    %425 = vmatpush1.bf16.msra.mxu0 0
    %426 = vmatprep.subr.bf16.mxu0 0
    %427 = vmatpush1.bf16.msra.mxu0 0
    %428 = vmatprep.subr.bf16.mxu0 0
    %429 = vmatpush1.bf16.msra.mxu0 0
    %430 = vmatprep.mubr.bf16.mxu0 0
    %431 = vmatmul.mubr.bf16.gmra.mrb[0].mxu0 %v221
    %v432 = vpop.f32.mrb[0].mxu0
    %v433 = vadd.f32 0.0, %v432
    %v434 = vpop.f32.mrb[0].mxu0
    %v435 = vpop.f32.mrb[0].mxu0
    %v436 = vadd.f32 0.0, %v435
    %v437 = vpop.f32.mrb[0].mxu0
    %438 = vmatprep.mubr.bf16.mxu0 0
    %439 = vmatmul.mubr.bf16.gmra.mrb[0].mxu0 %v224
    %v440 = vpop.f32.mrb[0].mxu0
    %v441 = vadd.f32 0.0, %v440
    %v442 = vpop.f32.mrb[0].mxu0
    %v443 = vpop.f32.mrb[0].mxu0
    %v444 = vadd.f32 0.0, %v443
    %v445 = vpop.f32.mrb[0].mxu0
    %446 = vdwg.mxu0
    %451 = vrot.lane.b32.xlu0 %v392, 32
    %v452 = vpop.permute.xlu0 %451
    %453 = vrot.lane.b32.xlu0 %v393, 32
    %v454 = vpop.permute.xlu0 %453
    %455 = vrot.lane.b32.xlu0 %v394, 32
    %v456 = vpop.permute.xlu0 %455
    %457 = vrot.lane.b32.xlu0 %v395, 32
    %v458 = vpop.permute.xlu0 %457
    %v463 = vsel %vm148, %v433, %v452
    %v464 = vsel %vm148, %v436, %v454
    %v465 = vsel %vm148, %v441, %v456
    %v466 = vsel %vm148, %v444, %v458
    %v467 = vld [vmem:[%s10] sm:$0xf]
    %v468 = vld [vmem:[%s10 + $0x4] sm:$0xf]
    %v469 = vld [vmem:[%s10 + $0x8] sm:$0xf]
    %v470 = vld [vmem:[%s10 + $0xc] sm:$0xf]
    %v471 = vld [vmem:[%s10 + $0x10] sm:$0xf]
    %v472 = vld [vmem:[%s10 + $0x14] sm:$0xf]
    %v473 = vld [vmem:[%s10 + $0x18] sm:$0xf]
    %v474 = vld [vmem:[%s10 + $0x1c] sm:$0xf]
    %v475 = vpack.c.bf16 %v464, %v463
    %v476 = vpack.c.bf16 %v466, %v465
    %v477 = vld [vmem:[%s11] sm:$0x1]
    %v479 = vlaneseq
    %v480 = vshrl.u32 %v479, 7
    %v481 = vsub.s32 0, %v480
    %v482 = vrot.slane %v477, %v481
    %v492 = vunpack.c.l.b16 %v467
    %v493 = vunpack.c.l.b16 %v468
    %v494 = vunpack.c.l.b16 %v469
    %v495 = vunpack.c.l.b16 %v470
    %v496 = vunpack.c.l.b16 %v471
    %v497 = vunpack.c.l.b16 %v472
    %v498 = vunpack.c.l.b16 %v473
    %v499 = vunpack.c.l.b16 %v474
    %v500 = vpack.c.b16 %v493, %v492
    %v501 = vpack.c.b16 %v495, %v494
    %v502 = vpack.c.b16 %v497, %v496
    %v503 = vpack.c.b16 %v499, %v498
    %v509 = vsel %vm336, %v475, 0
    %v512 = vsel %vm336, %v476, 0
    %514 = vmatprep.subr.bf16.mxu0 0
    %515 = vmatpush1.bf16.msra.mxu0 %v500
    %516 = vmatprep.subr.bf16.mxu0 0
    %517 = vmatpush1.bf16.msra.mxu0 %v501
    %518 = vmatprep.subr.bf16.mxu0 0
    %519 = vmatpush1.bf16.msra.mxu0 %v502
    %520 = vmatprep.subr.bf16.mxu0 0
    %521 = vmatpush1.bf16.msra.mxu0 %v503
    %522 = vmatprep.subr.bf16.mxu0 0
    %523 = vmatpush1.bf16.msra.mxu0 0
    %524 = vmatprep.subr.bf16.mxu0 0
    %525 = vmatpush1.bf16.msra.mxu0 0
    %526 = vmatprep.subr.bf16.mxu0 0
    %527 = vmatpush1.bf16.msra.mxu0 0
    %528 = vmatprep.subr.bf16.mxu0 0
    %529 = vmatpush1.bf16.msra.mxu0 0
    %530 = vmatprep.subr.bf16.mxu0 0
    %531 = vmatpush1.bf16.msra.mxu0 0
    %532 = vmatprep.subr.bf16.mxu0 0
    %533 = vmatpush1.bf16.msra.mxu0 0
    %534 = vmatprep.subr.bf16.mxu0 0
    %535 = vmatpush1.bf16.msra.mxu0 0
    %536 = vmatprep.subr.bf16.mxu0 0
    %537 = vmatpush1.bf16.msra.mxu0 0
    %538 = vmatprep.subr.bf16.mxu0 0
    %539 = vmatpush1.bf16.msra.mxu0 0
    %540 = vmatprep.subr.bf16.mxu0 0
    %541 = vmatpush1.bf16.msra.mxu0 0
    %542 = vmatprep.subr.bf16.mxu0 0
    %543 = vmatpush1.bf16.msra.mxu0 0
    %544 = vmatprep.subr.bf16.mxu0 0
    %545 = vmatpush1.bf16.msra.mxu0 0
    %546 = vmatprep.mubr.bf16.mxu0 0
    %547 = vmatmul.mubr.bf16.gmra.mrb[0].mxu0 %v509
    %v548 = vpop.f32.mrb[0].mxu0
    %v549 = vadd.f32 %v482, %v548
    %v550 = vpop.f32.mrb[0].mxu0
    %v551 = vpop.f32.mrb[0].mxu0
    %v552 = vadd.f32 %v482, %v551
    %v553 = vpop.f32.mrb[0].mxu0
    %554 = vmatprep.mubr.bf16.mxu0 0
    %555 = vmatmul.mubr.bf16.gmra.mrb[0].mxu0 %v512
    %v556 = vpop.f32.mrb[0].mxu0
    %v557 = vadd.f32 %v482, %v556
    %v558 = vpop.f32.mrb[0].mxu0
    %v559 = vpop.f32.mrb[0].mxu0
    %v560 = vadd.f32 %v482, %v559
    %v561 = vpop.f32.mrb[0].mxu0
    %562 = vdwg.mxu0
    %v563 = vmax.f32 %v549, 0.0
    %v564 = vmax.f32 %v552, 0.0
    %v565 = vmax.f32 %v557, 0.0
    %v566 = vmax.f32 %v560, 0.0
    %v567 = vld [vmem:[%s3] sm:$0x3]
    %v568 = vpack.c.bf16 %v564, %v563
    %v569 = vpack.c.bf16 %v566, %v565
    %v571 = vsel %vm148, %v567, 0
    %573 = vmatprep.subr.bf16.mxu0 0
    %574 = vmatpush1.bf16.msra.mxu0 %v568
    %575 = vmatprep.subr.bf16.mxu0 0
    %576 = vmatpush1.bf16.msra.mxu0 %v569
    %577 = vmatprep.subr.bf16.mxu0 0
    %578 = vmatpush1.bf16.msra.mxu0 0
    %579 = vmatprep.subr.bf16.mxu0 0
    %580 = vmatpush1.bf16.msra.mxu0 0
    %581 = vmatprep.subr.bf16.mxu0 0
    %582 = vmatpush1.bf16.msra.mxu0 0
    %583 = vmatprep.subr.bf16.mxu0 0
    %584 = vmatpush1.bf16.msra.mxu0 0
    %585 = vmatprep.subr.bf16.mxu0 0
    %586 = vmatpush1.bf16.msra.mxu0 0
    %587 = vmatprep.subr.bf16.mxu0 0
    %588 = vmatpush1.bf16.msra.mxu0 0
    %589 = vmatprep.subr.bf16.mxu0 0
    %590 = vmatpush1.bf16.msra.mxu0 0
    %591 = vmatprep.subr.bf16.mxu0 0
    %592 = vmatpush1.bf16.msra.mxu0 0
    %593 = vmatprep.subr.bf16.mxu0 0
    %594 = vmatpush1.bf16.msra.mxu0 0
    %595 = vmatprep.subr.bf16.mxu0 0
    %596 = vmatpush1.bf16.msra.mxu0 0
    %597 = vmatprep.subr.bf16.mxu0 0
    %598 = vmatpush1.bf16.msra.mxu0 0
    %599 = vmatprep.subr.bf16.mxu0 0
    %600 = vmatpush1.bf16.msra.mxu0 0
    %601 = vmatprep.subr.bf16.mxu0 0
    %602 = vmatpush1.bf16.msra.mxu0 0
    %603 = vmatprep.subr.bf16.mxu0 0
    %604 = vmatpush1.bf16.msra.mxu0 0
    %605 = vmatprep.mubr.bf16.mxu0 0
    %606 = vmatmul.mubr.bf16.gmra.mrb[0].mxu0 %v571
    %v607 = vpop.f32.mrb[0].mxu0
    %v608 = vadd.f32 0.0, %v607
    %v609 = vpop.f32.mrb[0].mxu0
    %v610 = vpop.f32.mrb[0].mxu0
    %v611 = vpop.f32.mrb[0].mxu0
    %612 = vdwg.mxu0
    %v613 = vld [vmem:[%s12] sm:$0xf]
    %v614 = vld [vmem:[%s12 + $0x4] sm:$0xf]
    %v615 = vld [vmem:[%s12 + $0x8] sm:$0xf]
    %v616 = vld [vmem:[%s12 + $0xc] sm:$0xf]
    %v617 = vpack.c.bf16 %v608, %v608
    %v622 = vunpack.c.l.b16 %v613
    %v623 = vunpack.c.l.b16 %v614
    %v624 = vunpack.c.l.b16 %v615
    %v625 = vunpack.c.l.b16 %v616
    %v626 = vpack.c.b16 %v623, %v622
    %v627 = vpack.c.b16 %v625, %v624
    %v631 = vsel %vm148, %v617, 0
    %633 = vmatprep.subr.bf16.mxu0 0
    %634 = vmatpush1.bf16.msra.mxu0 %v626
    %635 = vmatprep.subr.bf16.mxu0 0
    %636 = vmatpush1.bf16.msra.mxu0 %v627
    %637 = vmatprep.subr.bf16.mxu0 0
    %638 = vmatpush1.bf16.msra.mxu0 0
    %639 = vmatprep.subr.bf16.mxu0 0
    %640 = vmatpush1.bf16.msra.mxu0 0
    %641 = vmatprep.subr.bf16.mxu0 0
    %642 = vmatpush1.bf16.msra.mxu0 0
    %643 = vmatprep.subr.bf16.mxu0 0
    %644 = vmatpush1.bf16.msra.mxu0 0
    %645 = vmatprep.subr.bf16.mxu0 0
    %646 = vmatpush1.bf16.msra.mxu0 0
    %647 = vmatprep.subr.bf16.mxu0 0
    %648 = vmatpush1.bf16.msra.mxu0 0
    %649 = vmatprep.subr.bf16.mxu0 0
    %650 = vmatpush1.bf16.msra.mxu0 0
    %651 = vmatprep.subr.bf16.mxu0 0
    %652 = vmatpush1.bf16.msra.mxu0 0
    %653 = vmatprep.subr.bf16.mxu0 0
    %654 = vmatpush1.bf16.msra.mxu0 0
    %655 = vmatprep.subr.bf16.mxu0 0
    %656 = vmatpush1.bf16.msra.mxu0 0
    %657 = vmatprep.subr.bf16.mxu0 0
    %658 = vmatpush1.bf16.msra.mxu0 0
    %659 = vmatprep.subr.bf16.mxu0 0
    %660 = vmatpush1.bf16.msra.mxu0 0
    %661 = vmatprep.subr.bf16.mxu0 0
    %662 = vmatpush1.bf16.msra.mxu0 0
    %663 = vmatprep.subr.bf16.mxu0 0
    %664 = vmatpush1.bf16.msra.mxu0 0
    %665 = vmatprep.mubr.bf16.mxu0 0
    %666 = vmatmul.mubr.bf16.gmra.mrb[0].mxu0 %v631
    %v667 = vpop.f32.mrb[0].mxu0
    %v668 = vadd.f32 0.0, %v667
    %v669 = vpop.f32.mrb[0].mxu0
    %v670 = vpop.f32.mrb[0].mxu0
    %v671 = vpop.f32.mrb[0].mxu0
    %672 = vdwg.mxu0
    %v673 = vtanh.pop %v668
    %v674 = vld [vmem:[%s5] sm:$0xf]
    %v675 = vld [vmem:[%s5 + $0x4] sm:$0xf]
    %v676 = vld [vmem:[%s5 + $0x8] sm:$0xf]
    %v677 = vld [vmem:[%s5 + $0xc] sm:$0xf]
    %v678 = vpack.c.bf16 %v673, %v673
    %v683 = vunpack.c.l.b16 %v674
    %v684 = vunpack.c.l.b16 %v675
    %v685 = vunpack.c.l.b16 %v676
    %v686 = vunpack.c.l.b16 %v677
    %v687 = vpack.c.b16 %v684, %v683
    %v688 = vpack.c.b16 %v686, %v685
    %vm689 = vcmask 31744
    %v691 = vsel %vm689, %v687, 0
    %v694 = vsel %vm689, %v688, 0
    %vm696 = vcmask 1041408
    %v698 = vsel %vm696, %v678, 0
    %700 = vmatprep.subr.bf16.mxu0 0
    %701 = vmatpush1.bf16.msra.mxu0 %v698
    %702 = vmatprep.subr.bf16.mxu0 0
    %703 = vmatpush1.bf16.msra.mxu0 0
    %704 = vmatprep.subr.bf16.mxu0 0
    %705 = vmatpush1.bf16.msra.mxu0 0
    %706 = vmatprep.subr.bf16.mxu0 0
    %707 = vmatpush1.bf16.msra.mxu0 0
    %708 = vmatprep.subr.bf16.mxu0 0
    %709 = vmatpush1.bf16.msra.mxu0 0
    %710 = vmatprep.subr.bf16.mxu0 0
    %711 = vmatpush1.bf16.msra.mxu0 0
    %712 = vmatprep.subr.bf16.mxu0 0
    %713 = vmatpush1.bf16.msra.mxu0 0
    %714 = vmatprep.subr.bf16.mxu0 0
    %715 = vmatpush1.bf16.msra.mxu0 0
    %716 = vmatprep.subr.bf16.mxu0 0
    %717 = vmatpush1.bf16.msra.mxu0 0
    %718 = vmatprep.subr.bf16.mxu0 0
    %719 = vmatpush1.bf16.msra.mxu0 0
    %720 = vmatprep.subr.bf16.mxu0 0
    %721 = vmatpush1.bf16.msra.mxu0 0
    %722 = vmatprep.subr.bf16.mxu0 0
    %723 = vmatpush1.bf16.msra.mxu0 0
    %724 = vmatprep.subr.bf16.mxu0 0
    %725 = vmatpush1.bf16.msra.mxu0 0
    %726 = vmatprep.subr.bf16.mxu0 0
    %727 = vmatpush1.bf16.msra.mxu0 0
    %728 = vmatprep.subr.bf16.mxu0 0
    %729 = vmatpush1.bf16.msra.mxu0 0
    %730 = vmatprep.subr.bf16.mxu0 0
    %731 = vmatpush1.bf16.msra.mxu0 0
    %732 = vmatprep.mubr.bf16.mxu0 0
    %733 = vmatmul.mubr.bf16.gmra.mrb[0].mxu0 %v691
    %v734 = vpop.f32.mrb[0].mxu0
    %v735 = vadd.f32 0.0, %v734
    %v736 = vpop.f32.mrb[0].mxu0
    %v737 = vpop.f32.mrb[0].mxu0
    %v738 = vadd.f32 0.0, %v737
    %v739 = vpop.f32.mrb[0].mxu0
    %740 = vmatprep.mubr.bf16.mxu0 0
    %741 = vmatmul.mubr.bf16.gmra.mrb[0].mxu0 %v694
    %v742 = vpop.f32.mrb[0].mxu0
    %v743 = vadd.f32 0.0, %v742
    %v744 = vpop.f32.mrb[0].mxu0
    %v745 = vpop.f32.mrb[0].mxu0
    %v746 = vadd.f32 0.0, %v745
    %v747 = vpop.f32.mrb[0].mxu0
    %748 = vdwg.mxu0
    %v749 = vmul.f32 %v563, %v735
    %v750 = vmul.f32 %v564, %v738
    %v751 = vmul.f32 %v565, %v743
    %v752 = vmul.f32 %v566, %v746
    %v753 = vsel %vm148, %v749, 0.0
    %754 = vadd.xlane.f32.xlu0 %v753
    %v755 = vpop.xlane.xlu0 %754
    %v756 = vsel %vm148, %v750, 0.0
    %757 = vadd.xlane.f32.xlu0 %v756
    %v758 = vpop.xlane.xlu0 %757
    %v759 = vsel %vm148, %v751, 0.0
    %760 = vadd.xlane.f32.xlu0 %v759
    %v761 = vpop.xlane.xlu0 %760
    %v762 = vsel %vm148, %v752, 0.0
    %763 = vadd.xlane.f32.xlu0 %v762
    %v764 = vpop.xlane.xlu0 %763
    %v765 = vxor.u32 %v755, 2147483648
    %v766 = vxor.u32 %v758, 2147483648
    %v767 = vxor.u32 %v761, 2147483648
    %v768 = vxor.u32 %v764, 2147483648
    %v769 = vmul.f32 %v765, 1.442695
    %v770 = vpow.pop %v769
    %v771 = vmul.f32 %v766, 1.442695
    %v772 = vpow.pop %v771
    %v773 = vmul.f32 %v767, 1.442695
    %v774 = vpow.pop %v773
    %v775 = vmul.f32 %v768, 1.442695
    %v776 = vpow.pop %v775
    %v777 = vadd.f32 %v770, 1.0
    %v778 = vadd.f32 %v772, 1.0
    %v779 = vadd.f32 %v774, 1.0
    %v780 = vadd.f32 %v776, 1.0
    %v781 = vrcp.pop %v777
    %v782 = vmul.f32 1.0, %v781
    %v783 = vrcp.pop %v778
    %v784 = vmul.f32 1.0, %v783
    %v785 = vrcp.pop %v779
    %v786 = vmul.f32 1.0, %v785
    %v787 = vrcp.pop %v780
    %v788 = vmul.f32 1.0, %v787
    %v789 = vld [vmem:[%s4] sm:$0x3]
    %v790 = vmul.f32 %v782, %v563
    %v791 = vmul.f32 %v784, %v564
    %v792 = vmul.f32 %v786, %v565
    %v793 = vmul.f32 %v788, %v566
    %v794 = vpack.c.bf16 %v791, %v790
    %v795 = vpack.c.bf16 %v793, %v792
    %v797 = vsel %vm148, %v789, 0
    %799 = vmatprep.subr.bf16.mxu0 0
    %800 = vmatpush1.bf16.msra.mxu0 %v794
    %801 = vmatprep.subr.bf16.mxu0 0
    %802 = vmatpush1.bf16.msra.mxu0 %v795
    %803 = vmatprep.subr.bf16.mxu0 0
    %804 = vmatpush1.bf16.msra.mxu0 0
    %805 = vmatprep.subr.bf16.mxu0 0
    %806 = vmatpush1.bf16.msra.mxu0 0
    %807 = vmatprep.subr.bf16.mxu0 0
    %808 = vmatpush1.bf16.msra.mxu0 0
    %809 = vmatprep.subr.bf16.mxu0 0
    %810 = vmatpush1.bf16.msra.mxu0 0
    %811 = vmatprep.subr.bf16.mxu0 0
    %812 = vmatpush1.bf16.msra.mxu0 0
    %813 = vmatprep.subr.bf16.mxu0 0
    %814 = vmatpush1.bf16.msra.mxu0 0
    %815 = vmatprep.subr.bf16.mxu0 0
    %816 = vmatpush1.bf16.msra.mxu0 0
    %817 = vmatprep.subr.bf16.mxu0 0
    %818 = vmatpush1.bf16.msra.mxu0 0
    %819 = vmatprep.subr.bf16.mxu0 0
    %820 = vmatpush1.bf16.msra.mxu0 0
    %821 = vmatprep.subr.bf16.mxu0 0
    %822 = vmatpush1.bf16.msra.mxu0 0
    %823 = vmatprep.subr.bf16.mxu0 0
    %824 = vmatpush1.bf16.msra.mxu0 0
    %825 = vmatprep.subr.bf16.mxu0 0
    %826 = vmatpush1.bf16.msra.mxu0 0
    %827 = vmatprep.subr.bf16.mxu0 0
    %828 = vmatpush1.bf16.msra.mxu0 0
    %829 = vmatprep.subr.bf16.mxu0 0
    %830 = vmatpush1.bf16.msra.mxu0 0
    %831 = vmatprep.mubr.bf16.mxu0 0
    %832 = vmatmul.mubr.bf16.gmra.mrb[0].mxu0 %v797
    %v833 = vpop.f32.mrb[0].mxu0
    %v834 = vadd.f32 0.0, %v833
    %v835 = vpop.f32.mrb[0].mxu0
    %v836 = vpop.f32.mrb[0].mxu0
    %v837 = vpop.f32.mrb[0].mxu0
    %838 = vdwg.mxu0
    %v839 = vsel %vm148, %v834, 0.0
    %840 = vst [vmem:[#allocation2] sm:$0xf] %v839
    // Predicated region
    $region54: #{tpu_custom_call.1} parent=1 // pred_check
      _
    $region55: #{tpu_custom_call.1} parent=1 // pred_check_branch
      %842 = sbr.rel (0) target = $region57
    $region56: #{tpu_custom_call.1} parent=1 // pred_region
      %s844 = ssub.s32 64, 64
      %845 = vsyncadd [#allocation3], %s844
      %s847 = sshll.u32 [#allocation2], 4
      %s848 = int_to_ptr.vmem [resolvable:$true] %s847
      %850 = dma.vmem_to_hbm [thread:$0]  %s848, 64, %s13, [#allocation3]
    $region57: #{tpu_custom_call.1} parent=1 // pred_fallthru
      _
    // Predicated region
    $region58: #{tpu_custom_call.1} parent=1 // pred_check
      _
    $region59: #{tpu_custom_call.1} parent=1 // pred_check_branch
      %852 = sbr.rel (0) target = $region61
    $region60: #{tpu_custom_call.1} parent=1 // pred_region
      %853 = dma.done [#allocation3], 64
    $region61: #{tpu_custom_call.1} parent=1 // pred_fallthru
      _
    %854 = vsyncpa [#allocation3], 1

</llo_original>
